<compile_context>
chip_gen: v5e
topology: v5e:2x2
jax: 0.10.0
libtpu: 0.0.40
codegen_flags: <defaults>
</compile_context>

<pallas_src>
import jax
import jax.numpy as jnp
from jax.experimental import pallas as pl
from jax.experimental.pallas import tpu as pltpu

# ----- hyperparameters (small, consistent with the module) -----
IN = 1           # LSTM input_size (fixed by the module: nn.LSTM(input_size=1, ...))
H = 32           # hidden_size
C = 16           # c_size (fc_out output features)
N_LAYERS = 2     # num_layers
B = 8            # batch (8 fills the f32 sublane dimension)


def conductor_kernel(x_ref, h0_ref, c0_ref,
                     wi_ref, wh_ref, b_ref, wo_ref, bo_ref,
                     out_ref, h_ref, c_ref):
    # x_ref  : (B, H)              layer-0 input, zero-padded from (B, IN)
    # h0/c0  : (N_LAYERS, B, H)    previous state
    # wi/wh  : (N_LAYERS, 4, H, H) per-gate weights, pre-transposed (act @ w)
    # b      : (N_LAYERS, 4, 1, H) b_ih + b_hh, per gate
    # wo     : (H, C), bo : (1, C) fc_out
    x = x_ref[...]
    for layer in range(N_LAYERS):          # static unroll: whole chain visible to scheduler
        h_prev = h0_ref[layer]             # (B, H)
        c_prev = c0_ref[layer]             # (B, H)

        # gate order matches PyTorch nn.LSTM: i, f, g, o
        def gate(g, _x=x, _h=h_prev, _l=layer):
            return (jnp.dot(_x, wi_ref[_l, g], preferred_element_type=jnp.float32)
                    + jnp.dot(_h, wh_ref[_l, g], preferred_element_type=jnp.float32)
                    + b_ref[_l, g])

        i_g = jax.nn.sigmoid(gate(0))
        f_g = jax.nn.sigmoid(gate(1))
        g_g = jnp.tanh(gate(2))
        o_g = jax.nn.sigmoid(gate(3))

        c_new = f_g * c_prev + i_g * g_g
        h_new = o_g * jnp.tanh(c_new)

        h_ref[layer] = h_new
        c_ref[layer] = c_new
        x = h_new                           # input to the next stacked layer

    # fc_out on the last layer's output (the single-time-step LSTM output)
    out_ref[...] = (jnp.dot(x, wo_ref[...], preferred_element_type=jnp.float32)
                    + bo_ref[...])


def init_params(key):
    s = 0.1
    k = jax.random.split(key, 6)
    # per-layer, per-gate input weights; layer 0 has input_size = IN, padded with zero rows
    wi = jnp.zeros((N_LAYERS, 4, H, H), jnp.float32)
    wi = wi.at[0, :, :IN, :].set(s * jax.random.normal(k[0], (4, IN, H), jnp.float32))
    if N_LAYERS > 1:
        wi = wi.at[1:].set(s * jax.random.normal(k[1], (N_LAYERS - 1, 4, H, H), jnp.float32))
    wh = s * jax.random.normal(k[2], (N_LAYERS, 4, H, H), jnp.float32)
    b = s * jax.random.normal(k[3], (N_LAYERS, 4, 1, H), jnp.float32)   # b_ih + b_hh pre-summed
    wo = s * jax.random.normal(k[4], (H, C), jnp.float32)
    bo = s * jax.random.normal(k[5], (1, C), jnp.float32)
    return {"wi": wi, "wh": wh, "b": b, "wo": wo, "bo": bo}


@jax.jit
def conductor_forward(x, h0, c0, params):
    """x: (B, IN) f32; h0, c0: (N_LAYERS, B, H) f32.
    Returns (output (B, C), (h_new, c_new) each (N_LAYERS, B, H))."""
    x_pad = jnp.pad(x, ((0, 0), (0, H - IN)))        # layer-0 input padded to H columns
    vmem = pl.BlockSpec(memory_space=pltpu.MemorySpace.VMEM)
    args = [x_pad, h0, c0,
            params["wi"], params["wh"], params["b"], params["wo"], params["bo"]]
    out_shapes = (
        jax.ShapeDtypeStruct((B, C), jnp.float32),             # fc_out(output)
        jax.ShapeDtypeStruct((N_LAYERS, B, H), jnp.float32),   # new hidden
        jax.ShapeDtypeStruct((N_LAYERS, B, H), jnp.float32),   # new cell
    )
    out, h_new, c_new = pl.pallas_call(
        conductor_kernel,
        out_shape=out_shapes,
        in_specs=[vmem] * len(args),
        out_specs=(vmem, vmem, vmem),
    )(*args)
    return out, (h_new, c_new)


def conductor_ref(x, h0, c0, params):
    """Pure-JAX reference with identical semantics (for correctness check)."""
    wi, wh, b = params["wi"], params["wh"], params["b"]
    wo, bo = params["wo"], params["bo"]
    cur = jnp.pad(x, ((0, 0), (0, H - IN)))
    hs, cs = [], []
    for l in range(N_LAYERS):
        g = [cur @ wi[l, k] + h0[l] @ wh[l, k] + b[l, k] for k in range(4)]
        i_g = jax.nn.sigmoid(g[0])
        f_g = jax.nn.sigmoid(g[1])
        g_g = jnp.tanh(g[2])
        o_g = jax.nn.sigmoid(g[3])
        c = f_g * c0[l] + i_g * g_g
        h = o_g * jnp.tanh(c)
        hs.append(h)
        cs.append(c)
        cur = h
    out = cur @ wo + bo
    return out, jnp.stack(hs), jnp.stack(cs)


if __name__ == "__main__":
    key = jax.random.PRNGKey(0)
    kp, kx, kh, kc = jax.random.split(key, 4)

    params = init_params(kp)
    x = jax.random.normal(kx, (B, IN), jnp.float32)
    h0 = jax.random.normal(kh, (N_LAYERS, B, H), jnp.float32)
    c0 = jax.random.normal(kc, (N_LAYERS, B, H), jnp.float32)

    out, (h_new, c_new) = conductor_forward(x, h0, c0, params)
    jax.block_until_ready((out, h_new, c_new))

    assert out.shape == (B, C)
    assert h_new.shape == (N_LAYERS, B, H) and c_new.shape == (N_LAYERS, B, H)

    ref_out, ref_h, ref_c = conductor_ref(x, h0, c0, params)
    assert jnp.allclose(out, ref_out, atol=1e-5, rtol=1e-5)
    assert jnp.allclose(h_new, ref_h, atol=1e-5, rtol=1e-5)
    assert jnp.allclose(c_new, ref_c, atol=1e-5, rtol=1e-5)

    print("KERNEL_OK")
</pallas_src>

<mosaic_0001>
module attributes {stable_mosaic.version = 11 : i64} {
  func.func @conductor_kernel(%arg0: memref<8x32xf32, #tpu.memory_space<vmem>>, %arg1: memref<2x8x32xf32, #tpu.memory_space<vmem>>, %arg2: memref<2x8x32xf32, #tpu.memory_space<vmem>>, %arg3: memref<2x4x32x32xf32, #tpu.memory_space<vmem>>, %arg4: memref<2x4x32x32xf32, #tpu.memory_space<vmem>>, %arg5: memref<2x4x1x32xf32, #tpu.memory_space<vmem>>, %arg6: memref<32x16xf32, #tpu.memory_space<vmem>>, %arg7: memref<1x16xf32, #tpu.memory_space<vmem>>, %arg8: memref<8x16xf32, #tpu.memory_space<vmem>>, %arg9: memref<2x8x32xf32, #tpu.memory_space<vmem>>, %arg10: memref<2x8x32xf32, #tpu.memory_space<vmem>>) attributes {dimension_semantics = [], scalar_prefetch = 0 : i64, scratch_operands = 0 : i64, tpu.core_type = #tpu.core_type<tc>} {
    %c0 = arith.constant 0 : index
    %c0_0 = arith.constant 0 : index
    %0 = vector.load %arg0[%c0, %c0_0] : memref<8x32xf32, #tpu.memory_space<vmem>>, vector<8x32xf32>
    %c0_1 = arith.constant 0 : index
    %c0_2 = arith.constant 0 : index
    %c0_3 = arith.constant 0 : index
    %1 = vector.load %arg1[%c0_1, %c0_2, %c0_3] : memref<2x8x32xf32, #tpu.memory_space<vmem>>, vector<1x8x32xf32>
    %2 = vector.shape_cast %1 : vector<1x8x32xf32> to vector<8x32xf32>
    %c0_4 = arith.constant 0 : index
    %c0_5 = arith.constant 0 : index
    %c0_6 = arith.constant 0 : index
    %3 = vector.load %arg2[%c0_4, %c0_5, %c0_6] : memref<2x8x32xf32, #tpu.memory_space<vmem>>, vector<1x8x32xf32>
    %4 = vector.shape_cast %3 : vector<1x8x32xf32> to vector<8x32xf32>
    %c0_7 = arith.constant 0 : index
    %c0_8 = arith.constant 0 : index
    %c0_9 = arith.constant 0 : index
    %c0_10 = arith.constant 0 : index
    %5 = vector.load %arg3[%c0_7, %c0_8, %c0_9, %c0_10] : memref<2x4x32x32xf32, #tpu.memory_space<vmem>>, vector<1x1x32x32xf32>
    %6 = vector.shape_cast %5 : vector<1x1x32x32xf32> to vector<32x32xf32>
    %cst = arith.constant dense<0.000000e+00> : vector<8x32xf32>
    %7 = tpu.matmul %0, %6, %cst {dimension_numbers = #tpu.dot_dimension_numbers<[1], [0], [0], [1], [0, 0, 1, 1], [], []>} : vector<8x32xf32>, vector<32x32xf32>, vector<8x32xf32> -> vector<8x32xf32>
    %c0_11 = arith.constant 0 : index
    %c0_12 = arith.constant 0 : index
    %c0_13 = arith.constant 0 : index
    %c0_14 = arith.constant 0 : index
    %8 = vector.load %arg4[%c0_11, %c0_12, %c0_13, %c0_14] : memref<2x4x32x32xf32, #tpu.memory_space<vmem>>, vector<1x1x32x32xf32>
    %9 = vector.shape_cast %8 : vector<1x1x32x32xf32> to vector<32x32xf32>
    %cst_15 = arith.constant dense<0.000000e+00> : vector<8x32xf32>
    %10 = tpu.matmul %2, %9, %cst_15 {dimension_numbers = #tpu.dot_dimension_numbers<[1], [0], [0], [1], [0, 0, 1, 1], [], []>} : vector<8x32xf32>, vector<32x32xf32>, vector<8x32xf32> -> vector<8x32xf32>
    %11 = arith.addf %7, %10 : vector<8x32xf32>
    %c0_16 = arith.constant 0 : index
    %c0_17 = arith.constant 0 : index
    %c0_18 = arith.constant 0 : index
    %c0_19 = arith.constant 0 : index
    %12 = vector.load %arg5[%c0_16, %c0_17, %c0_18, %c0_19] : memref<2x4x1x32xf32, #tpu.memory_space<vmem>>, vector<1x1x1x32xf32>
    %13 = vector.shape_cast %12 : vector<1x1x1x32xf32> to vector<1x32xf32>
    %14 = vector.broadcast %13 : vector<1x32xf32> to vector<8x32xf32>
    %15 = arith.addf %11, %14 : vector<8x32xf32>
    %16 = arith.negf %15 : vector<8x32xf32>
    %17 = math.exp %16 : vector<8x32xf32>
    %cst_20 = arith.constant 1.000000e+00 : f32
    %18 = vector.broadcast %cst_20 : f32 to vector<8x32xf32>
    %19 = arith.addf %18, %17 : vector<8x32xf32>
    %20 = arith.divf %18, %19 : vector<8x32xf32>
    %c0_21 = arith.constant 0 : index
    %c1 = arith.constant 1 : index
    %c0_22 = arith.constant 0 : index
    %c0_23 = arith.constant 0 : index
    %21 = vector.load %arg3[%c0_21, %c1, %c0_22, %c0_23] : memref<2x4x32x32xf32, #tpu.memory_space<vmem>>, vector<1x1x32x32xf32>
    %22 = vector.shape_cast %21 : vector<1x1x32x32xf32> to vector<32x32xf32>
    %cst_24 = arith.constant dense<0.000000e+00> : vector<8x32xf32>
    %23 = tpu.matmul %0, %22, %cst_24 {dimension_numbers = #tpu.dot_dimension_numbers<[1], [0], [0], [1], [0, 0, 1, 1], [], []>} : vector<8x32xf32>, vector<32x32xf32>, vector<8x32xf32> -> vector<8x32xf32>
    %c0_25 = arith.constant 0 : index
    %c1_26 = arith.constant 1 : index
    %c0_27 = arith.constant 0 : index
    %c0_28 = arith.constant 0 : index
    %24 = vector.load %arg4[%c0_25, %c1_26, %c0_27, %c0_28] : memref<2x4x32x32xf32, #tpu.memory_space<vmem>>, vector<1x1x32x32xf32>
    %25 = vector.shape_cast %24 : vector<1x1x32x32xf32> to vector<32x32xf32>
    %cst_29 = arith.constant dense<0.000000e+00> : vector<8x32xf32>
    %26 = tpu.matmul %2, %25, %cst_29 {dimension_numbers = #tpu.dot_dimension_numbers<[1], [0], [0], [1], [0, 0, 1, 1], [], []>} : vector<8x32xf32>, vector<32x32xf32>, vector<8x32xf32> -> vector<8x32xf32>
    %27 = arith.addf %23, %26 : vector<8x32xf32>
    %c0_30 = arith.constant 0 : index
    %c1_31 = arith.constant 1 : index
    %c0_32 = arith.constant 0 : index
    %c0_33 = arith.constant 0 : index
    %28 = vector.load %arg5[%c0_30, %c1_31, %c0_32, %c0_33] : memref<2x4x1x32xf32, #tpu.memory_space<vmem>>, vector<1x1x1x32xf32>
    %29 = vector.shape_cast %28 : vector<1x1x1x32xf32> to vector<1x32xf32>
    %30 = vector.broadcast %29 : vector<1x32xf32> to vector<8x32xf32>
    %31 = arith.addf %27, %30 : vector<8x32xf32>
    %32 = arith.negf %31 : vector<8x32xf32>
    %33 = math.exp %32 : vector<8x32xf32>
    %cst_34 = arith.constant 1.000000e+00 : f32
    %34 = vector.broadcast %cst_34 : f32 to vector<8x32xf32>
    %35 = arith.addf %34, %33 : vector<8x32xf32>
    %36 = arith.divf %34, %35 : vector<8x32xf32>
    %c0_35 = arith.constant 0 : index
    %c2 = arith.constant 2 : index
    %c0_36 = arith.constant 0 : index
    %c0_37 = arith.constant 0 : index
    %37 = vector.load %arg3[%c0_35, %c2, %c0_36, %c0_37] : memref<2x4x32x32xf32, #tpu.memory_space<vmem>>, vector<1x1x32x32xf32>
    %38 = vector.shape_cast %37 : vector<1x1x32x32xf32> to vector<32x32xf32>
    %cst_38 = arith.constant dense<0.000000e+00> : vector<8x32xf32>
    %39 = tpu.matmul %0, %38, %cst_38 {dimension_numbers = #tpu.dot_dimension_numbers<[1], [0], [0], [1], [0, 0, 1, 1], [], []>} : vector<8x32xf32>, vector<32x32xf32>, vector<8x32xf32> -> vector<8x32xf32>
    %c0_39 = arith.constant 0 : index
    %c2_40 = arith.constant 2 : index
    %c0_41 = arith.constant 0 : index
    %c0_42 = arith.constant 0 : index
    %40 = vector.load %arg4[%c0_39, %c2_40, %c0_41, %c0_42] : memref<2x4x32x32xf32, #tpu.memory_space<vmem>>, vector<1x1x32x32xf32>
    %41 = vector.shape_cast %40 : vector<1x1x32x32xf32> to vector<32x32xf32>
    %cst_43 = arith.constant dense<0.000000e+00> : vector<8x32xf32>
    %42 = tpu.matmul %2, %41, %cst_43 {dimension_numbers = #tpu.dot_dimension_numbers<[1], [0], [0], [1], [0, 0, 1, 1], [], []>} : vector<8x32xf32>, vector<32x32xf32>, vector<8x32xf32> -> vector<8x32xf32>
    %43 = arith.addf %39, %42 : vector<8x32xf32>
    %c0_44 = arith.constant 0 : index
    %c2_45 = arith.constant 2 : index
    %c0_46 = arith.constant 0 : index
    %c0_47 = arith.constant 0 : index
    %44 = vector.load %arg5[%c0_44, %c2_45, %c0_46, %c0_47] : memref<2x4x1x32xf32, #tpu.memory_space<vmem>>, vector<1x1x1x32xf32>
    %45 = vector.shape_cast %44 : vector<1x1x1x32xf32> to vector<1x32xf32>
    %46 = vector.broadcast %45 : vector<1x32xf32> to vector<8x32xf32>
    %47 = arith.addf %43, %46 : vector<8x32xf32>
    %48 = math.tanh %47 : vector<8x32xf32>
    %c0_48 = arith.constant 0 : index
    %c3 = arith.constant 3 : index
    %c0_49 = arith.constant 0 : index
    %c0_50 = arith.constant 0 : index
    %49 = vector.load %arg3[%c0_48, %c3, %c0_49, %c0_50] : memref<2x4x32x32xf32, #tpu.memory_space<vmem>>, vector<1x1x32x32xf32>
    %50 = vector.shape_cast %49 : vector<1x1x32x32xf32> to vector<32x32xf32>
    %cst_51 = arith.constant dense<0.000000e+00> : vector<8x32xf32>
    %51 = tpu.matmul %0, %50, %cst_51 {dimension_numbers = #tpu.dot_dimension_numbers<[1], [0], [0], [1], [0, 0, 1, 1], [], []>} : vector<8x32xf32>, vector<32x32xf32>, vector<8x32xf32> -> vector<8x32xf32>
    %c0_52 = arith.constant 0 : index
    %c3_53 = arith.constant 3 : index
    %c0_54 = arith.constant 0 : index
    %c0_55 = arith.constant 0 : index
    %52 = vector.load %arg4[%c0_52, %c3_53, %c0_54, %c0_55] : memref<2x4x32x32xf32, #tpu.memory_space<vmem>>, vector<1x1x32x32xf32>
    %53 = vector.shape_cast %52 : vector<1x1x32x32xf32> to vector<32x32xf32>
    %cst_56 = arith.constant dense<0.000000e+00> : vector<8x32xf32>
    %54 = tpu.matmul %2, %53, %cst_56 {dimension_numbers = #tpu.dot_dimension_numbers<[1], [0], [0], [1], [0, 0, 1, 1], [], []>} : vector<8x32xf32>, vector<32x32xf32>, vector<8x32xf32> -> vector<8x32xf32>
    %55 = arith.addf %51, %54 : vector<8x32xf32>
    %c0_57 = arith.constant 0 : index
    %c3_58 = arith.constant 3 : index
    %c0_59 = arith.constant 0 : index
    %c0_60 = arith.constant 0 : index
    %56 = vector.load %arg5[%c0_57, %c3_58, %c0_59, %c0_60] : memref<2x4x1x32xf32, #tpu.memory_space<vmem>>, vector<1x1x1x32xf32>
    %57 = vector.shape_cast %56 : vector<1x1x1x32xf32> to vector<1x32xf32>
    %58 = vector.broadcast %57 : vector<1x32xf32> to vector<8x32xf32>
    %59 = arith.addf %55, %58 : vector<8x32xf32>
    %60 = arith.negf %59 : vector<8x32xf32>
    %61 = math.exp %60 : vector<8x32xf32>
    %cst_61 = arith.constant 1.000000e+00 : f32
    %62 = vector.broadcast %cst_61 : f32 to vector<8x32xf32>
    %63 = arith.addf %62, %61 : vector<8x32xf32>
    %64 = arith.divf %62, %63 : vector<8x32xf32>
    %65 = arith.mulf %36, %4 : vector<8x32xf32>
    %66 = arith.mulf %20, %48 : vector<8x32xf32>
    %67 = arith.addf %65, %66 : vector<8x32xf32>
    %68 = math.tanh %67 : vector<8x32xf32>
    %69 = arith.mulf %64, %68 : vector<8x32xf32>
    %c0_62 = arith.constant 0 : index
    %c0_63 = arith.constant 0 : index
    %c0_64 = arith.constant 0 : index
    %70 = vector.load %arg9[%c0_62, %c0_63, %c0_64] : memref<2x8x32xf32, #tpu.memory_space<vmem>>, vector<1x8x32xf32>
    %71 = vector.shape_cast %70 : vector<1x8x32xf32> to vector<8x32xf32>
    %72 = vector.shape_cast %69 : vector<8x32xf32> to vector<1x8x32xf32>
    tpu.vector_store %arg9[%c0_62, %c0_63, %c0_64], %72 {strides = array<i32>} : memref<2x8x32xf32, #tpu.memory_space<vmem>>, vector<1x8x32xf32>,
    %c0_65 = arith.constant 0 : index
    %c0_66 = arith.constant 0 : index
    %c0_67 = arith.constant 0 : index
    %73 = vector.load %arg10[%c0_65, %c0_66, %c0_67] : memref<2x8x32xf32, #tpu.memory_space<vmem>>, vector<1x8x32xf32>
    %74 = vector.shape_cast %73 : vector<1x8x32xf32> to vector<8x32xf32>
    %75 = vector.shape_cast %67 : vector<8x32xf32> to vector<1x8x32xf32>
    tpu.vector_store %arg10[%c0_65, %c0_66, %c0_67], %75 {strides = array<i32>} : memref<2x8x32xf32, #tpu.memory_space<vmem>>, vector<1x8x32xf32>,
    %c1_68 = arith.constant 1 : index
    %c0_69 = arith.constant 0 : index
    %c0_70 = arith.constant 0 : index
    %76 = vector.load %arg1[%c1_68, %c0_69, %c0_70] : memref<2x8x32xf32, #tpu.memory_space<vmem>>, vector<1x8x32xf32>
    %77 = vector.shape_cast %76 : vector<1x8x32xf32> to vector<8x32xf32>
    %c1_71 = arith.constant 1 : index
    %c0_72 = arith.constant 0 : index
    %c0_73 = arith.constant 0 : index
    %78 = vector.load %arg2[%c1_71, %c0_72, %c0_73] : memref<2x8x32xf32, #tpu.memory_space<vmem>>, vector<1x8x32xf32>
    %79 = vector.shape_cast %78 : vector<1x8x32xf32> to vector<8x32xf32>
    %c1_74 = arith.constant 1 : index
    %c0_75 = arith.constant 0 : index
    %c0_76 = arith.constant 0 : index
    %c0_77 = arith.constant 0 : index
    %80 = vector.load %arg3[%c1_74, %c0_75, %c0_76, %c0_77] : memref<2x4x32x32xf32, #tpu.memory_space<vmem>>, vector<1x1x32x32xf32>
    %81 = vector.shape_cast %80 : vector<1x1x32x32xf32> to vector<32x32xf32>
    %cst_78 = arith.constant dense<0.000000e+00> : vector<8x32xf32>
    %82 = tpu.matmul %69, %81, %cst_78 {dimension_numbers = #tpu.dot_dimension_numbers<[1], [0], [0], [1], [0, 0, 1, 1], [], []>} : vector<8x32xf32>, vector<32x32xf32>, vector<8x32xf32> -> vector<8x32xf32>
    %c1_79 = arith.constant 1 : index
    %c0_80 = arith.constant 0 : index
    %c0_81 = arith.constant 0 : index
    %c0_82 = arith.constant 0 : index
    %83 = vector.load %arg4[%c1_79, %c0_80, %c0_81, %c0_82] : memref<2x4x32x32xf32, #tpu.memory_space<vmem>>, vector<1x1x32x32xf32>
    %84 = vector.shape_cast %83 : vector<1x1x32x32xf32> to vector<32x32xf32>
    %cst_83 = arith.constant dense<0.000000e+00> : vector<8x32xf32>
    %85 = tpu.matmul %77, %84, %cst_83 {dimension_numbers = #tpu.dot_dimension_numbers<[1], [0], [0], [1], [0, 0, 1, 1], [], []>} : vector<8x32xf32>, vector<32x32xf32>, vector<8x32xf32> -> vector<8x32xf32>
    %86 = arith.addf %82, %85 : vector<8x32xf32>
    %c1_84 = arith.constant 1 : index
    %c0_85 = arith.constant 0 : index
    %c0_86 = arith.constant 0 : index
    %c0_87 = arith.constant 0 : index
    %87 = vector.load %arg5[%c1_84, %c0_85, %c0_86, %c0_87] : memref<2x4x1x32xf32, #tpu.memory_space<vmem>>, vector<1x1x1x32xf32>
    %88 = vector.shape_cast %87 : vector<1x1x1x32xf32> to vector<1x32xf32>
    %89 = vector.broadcast %88 : vector<1x32xf32> to vector<8x32xf32>
    %90 = arith.addf %86, %89 : vector<8x32xf32>
    %91 = arith.negf %90 : vector<8x32xf32>
    %92 = math.exp %91 : vector<8x32xf32>
    %cst_88 = arith.constant 1.000000e+00 : f32
    %93 = vector.broadcast %cst_88 : f32 to vector<8x32xf32>
    %94 = arith.addf %93, %92 : vector<8x32xf32>
    %95 = arith.divf %93, %94 : vector<8x32xf32>
    %c1_89 = arith.constant 1 : index
    %c1_90 = arith.constant 1 : index
    %c0_91 = arith.constant 0 : index
    %c0_92 = arith.constant 0 : index
    %96 = vector.load %arg3[%c1_89, %c1_90, %c0_91, %c0_92] : memref<2x4x32x32xf32, #tpu.memory_space<vmem>>, vector<1x1x32x32xf32>
    %97 = vector.shape_cast %96 : vector<1x1x32x32xf32> to vector<32x32xf32>
    %cst_93 = arith.constant dense<0.000000e+00> : vector<8x32xf32>
    %98 = tpu.matmul %69, %97, %cst_93 {dimension_numbers = #tpu.dot_dimension_numbers<[1], [0], [0], [1], [0, 0, 1, 1], [], []>} : vector<8x32xf32>, vector<32x32xf32>, vector<8x32xf32> -> vector<8x32xf32>
    %c1_94 = arith.constant 1 : index
    %c1_95 = arith.constant 1 : index
    %c0_96 = arith.constant 0 : index
    %c0_97 = arith.constant 0 : index
    %99 = vector.load %arg4[%c1_94, %c1_95, %c0_96, %c0_97] : memref<2x4x32x32xf32, #tpu.memory_space<vmem>>, vector<1x1x32x32xf32>
    %100 = vector.shape_cast %99 : vector<1x1x32x32xf32> to vector<32x32xf32>
    %cst_98 = arith.constant dense<0.000000e+00> : vector<8x32xf32>
    %101 = tpu.matmul %77, %100, %cst_98 {dimension_numbers = #tpu.dot_dimension_numbers<[1], [0], [0], [1], [0, 0, 1, 1], [], []>} : vector<8x32xf32>, vector<32x32xf32>, vector<8x32xf32> -> vector<8x32xf32>
    %102 = arith.addf %98, %101 : vector<8x32xf32>
    %c1_99 = arith.constant 1 : index
    %c1_100 = arith.constant 1 : index
    %c0_101 = arith.constant 0 : index
    %c0_102 = arith.constant 0 : index
    %103 = vector.load %arg5[%c1_99, %c1_100, %c0_101, %c0_102] : memref<2x4x1x32xf32, #tpu.memory_space<vmem>>, vector<1x1x1x32xf32>
    %104 = vector.shape_cast %103 : vector<1x1x1x32xf32> to vector<1x32xf32>
    %105 = vector.broadcast %104 : vector<1x32xf32> to vector<8x32xf32>
    %106 = arith.addf %102, %105 : vector<8x32xf32>
    %107 = arith.negf %106 : vector<8x32xf32>
    %108 = math.exp %107 : vector<8x32xf32>
    %cst_103 = arith.constant 1.000000e+00 : f32
    %109 = vector.broadcast %cst_103 : f32 to vector<8x32xf32>
    %110 = arith.addf %109, %108 : vector<8x32xf32>
    %111 = arith.divf %109, %110 : vector<8x32xf32>
    %c1_104 = arith.constant 1 : index
    %c2_105 = arith.constant 2 : index
    %c0_106 = arith.constant 0 : index
    %c0_107 = arith.constant 0 : index
    %112 = vector.load %arg3[%c1_104, %c2_105, %c0_106, %c0_107] : memref<2x4x32x32xf32, #tpu.memory_space<vmem>>, vector<1x1x32x32xf32>
    %113 = vector.shape_cast %112 : vector<1x1x32x32xf32> to vector<32x32xf32>
    %cst_108 = arith.constant dense<0.000000e+00> : vector<8x32xf32>
    %114 = tpu.matmul %69, %113, %cst_108 {dimension_numbers = #tpu.dot_dimension_numbers<[1], [0], [0], [1], [0, 0, 1, 1], [], []>} : vector<8x32xf32>, vector<32x32xf32>, vector<8x32xf32> -> vector<8x32xf32>
    %c1_109 = arith.constant 1 : index
    %c2_110 = arith.constant 2 : index
    %c0_111 = arith.constant 0 : index
    %c0_112 = arith.constant 0 : index
    %115 = vector.load %arg4[%c1_109, %c2_110, %c0_111, %c0_112] : memref<2x4x32x32xf32, #tpu.memory_space<vmem>>, vector<1x1x32x32xf32>
    %116 = vector.shape_cast %115 : vector<1x1x32x32xf32> to vector<32x32xf32>
    %cst_113 = arith.constant dense<0.000000e+00> : vector<8x32xf32>
    %117 = tpu.matmul %77, %116, %cst_113 {dimension_numbers = #tpu.dot_dimension_numbers<[1], [0], [0], [1], [0, 0, 1, 1], [], []>} : vector<8x32xf32>, vector<32x32xf32>, vector<8x32xf32> -> vector<8x32xf32>
    %118 = arith.addf %114, %117 : vector<8x32xf32>
    %c1_114 = arith.constant 1 : index
    %c2_115 = arith.constant 2 : index
    %c0_116 = arith.constant 0 : index
    %c0_117 = arith.constant 0 : index
    %119 = vector.load %arg5[%c1_114, %c2_115, %c0_116, %c0_117] : memref<2x4x1x32xf32, #tpu.memory_space<vmem>>, vector<1x1x1x32xf32>
    %120 = vector.shape_cast %119 : vector<1x1x1x32xf32> to vector<1x32xf32>
    %121 = vector.broadcast %120 : vector<1x32xf32> to vector<8x32xf32>
    %122 = arith.addf %118, %121 : vector<8x32xf32>
    %123 = math.tanh %122 : vector<8x32xf32>
    %c1_118 = arith.constant 1 : index
    %c3_119 = arith.constant 3 : index
    %c0_120 = arith.constant 0 : index
    %c0_121 = arith.constant 0 : index
    %124 = vector.load %arg3[%c1_118, %c3_119, %c0_120, %c0_121] : memref<2x4x32x32xf32, #tpu.memory_space<vmem>>, vector<1x1x32x32xf32>
    %125 = vector.shape_cast %124 : vector<1x1x32x32xf32> to vector<32x32xf32>
    %cst_122 = arith.constant dense<0.000000e+00> : vector<8x32xf32>
    %126 = tpu.matmul %69, %125, %cst_122 {dimension_numbers = #tpu.dot_dimension_numbers<[1], [0], [0], [1], [0, 0, 1, 1], [], []>} : vector<8x32xf32>, vector<32x32xf32>, vector<8x32xf32> -> vector<8x32xf32>
    %c1_123 = arith.constant 1 : index
    %c3_124 = arith.constant 3 : index
    %c0_125 = arith.constant 0 : index
    %c0_126 = arith.constant 0 : index
    %127 = vector.load %arg4[%c1_123, %c3_124, %c0_125, %c0_126] : memref<2x4x32x32xf32, #tpu.memory_space<vmem>>, vector<1x1x32x32xf32>
    %128 = vector.shape_cast %127 : vector<1x1x32x32xf32> to vector<32x32xf32>
    %cst_127 = arith.constant dense<0.000000e+00> : vector<8x32xf32>
    %129 = tpu.matmul %77, %128, %cst_127 {dimension_numbers = #tpu.dot_dimension_numbers<[1], [0], [0], [1], [0, 0, 1, 1], [], []>} : vector<8x32xf32>, vector<32x32xf32>, vector<8x32xf32> -> vector<8x32xf32>
    %130 = arith.addf %126, %129 : vector<8x32xf32>
    %c1_128 = arith.constant 1 : index
    %c3_129 = arith.constant 3 : index
    %c0_130 = arith.constant 0 : index
    %c0_131 = arith.constant 0 : index
    %131 = vector.load %arg5[%c1_128, %c3_129, %c0_130, %c0_131] : memref<2x4x1x32xf32, #tpu.memory_space<vmem>>, vector<1x1x1x32xf32>
    %132 = vector.shape_cast %131 : vector<1x1x1x32xf32> to vector<1x32xf32>
    %133 = vector.broadcast %132 : vector<1x32xf32> to vector<8x32xf32>
    %134 = arith.addf %130, %133 : vector<8x32xf32>
    %135 = arith.negf %134 : vector<8x32xf32>
    %136 = math.exp %135 : vector<8x32xf32>
    %cst_132 = arith.constant 1.000000e+00 : f32
    %137 = vector.broadcast %cst_132 : f32 to vector<8x32xf32>
    %138 = arith.addf %137, %136 : vector<8x32xf32>
    %139 = arith.divf %137, %138 : vector<8x32xf32>
    %140 = arith.mulf %111, %79 : vector<8x32xf32>
    %141 = arith.mulf %95, %123 : vector<8x32xf32>
    %142 = arith.addf %140, %141 : vector<8x32xf32>
    %143 = math.tanh %142 : vector<8x32xf32>
    %144 = arith.mulf %139, %143 : vector<8x32xf32>
    %c1_133 = arith.constant 1 : index
    %c0_134 = arith.constant 0 : index
    %c0_135 = arith.constant 0 : index
    %145 = vector.load %arg9[%c1_133, %c0_134, %c0_135] : memref<2x8x32xf32, #tpu.memory_space<vmem>>, vector<1x8x32xf32>
    %146 = vector.shape_cast %145 : vector<1x8x32xf32> to vector<8x32xf32>
    %147 = vector.shape_cast %144 : vector<8x32xf32> to vector<1x8x32xf32>
    tpu.vector_store %arg9[%c1_133, %c0_134, %c0_135], %147 {strides = array<i32>} : memref<2x8x32xf32, #tpu.memory_space<vmem>>, vector<1x8x32xf32>,
    %c1_136 = arith.constant 1 : index
    %c0_137 = arith.constant 0 : index
    %c0_138 = arith.constant 0 : index
    %148 = vector.load %arg10[%c1_136, %c0_137, %c0_138] : memref<2x8x32xf32, #tpu.memory_space<vmem>>, vector<1x8x32xf32>
    %149 = vector.shape_cast %148 : vector<1x8x32xf32> to vector<8x32xf32>
    %150 = vector.shape_cast %142 : vector<8x32xf32> to vector<1x8x32xf32>
    tpu.vector_store %arg10[%c1_136, %c0_137, %c0_138], %150 {strides = array<i32>} : memref<2x8x32xf32, #tpu.memory_space<vmem>>, vector<1x8x32xf32>,
    %c0_139 = arith.constant 0 : index
    %c0_140 = arith.constant 0 : index
    %151 = vector.load %arg6[%c0_139, %c0_140] : memref<32x16xf32, #tpu.memory_space<vmem>>, vector<32x16xf32>
    %cst_141 = arith.constant dense<0.000000e+00> : vector<8x16xf32>
    %152 = tpu.matmul %144, %151, %cst_141 {dimension_numbers = #tpu.dot_dimension_numbers<[1], [0], [0], [1], [0, 0, 1, 1], [], []>} : vector<8x32xf32>, vector<32x16xf32>, vector<8x16xf32> -> vector<8x16xf32>
    %c0_142 = arith.constant 0 : index
    %c0_143 = arith.constant 0 : index
    %153 = vector.load %arg7[%c0_142, %c0_143] : memref<1x16xf32, #tpu.memory_space<vmem>>, vector<1x16xf32>
    %154 = vector.broadcast %153 : vector<1x16xf32> to vector<8x16xf32>
    %155 = arith.addf %152, %154 : vector<8x16xf32>
    %c0_144 = arith.constant 0 : index
    %c0_145 = arith.constant 0 : index
    %156 = vector.load %arg8[%c0_144, %c0_145] : memref<8x16xf32, #tpu.memory_space<vmem>>, vector<8x16xf32>
    tpu.vector_store %arg8[%c0_144, %c0_145], %155 {strides = array<i32>} : memref<8x16xf32, #tpu.memory_space<vmem>>, vector<8x16xf32>,
    return
  }
}

</mosaic_0001>

<llo_original>
// kernel: conductor_forward.1
$region0: #{conductor_forward.1}
  #allocation0 [shape = 'u32[]', space=smem, size = 0x4, offset = 0x4, fixed_abs, tag = 'smem constant byte address 0x4 - core index']
  #allocation1 [shape = 'u32[72,128]{1,0:T(1,128)}', space=vmem, size = 0x9000, scoped, tag = 'internal scratch']
  %s0 = inlined_call_operand.vmem [shape: f32[8,32], index: 0, kind: input, shape index: {}]
  %s1 = inlined_call_operand.vmem [shape: f32[2,8,32], index: 1, kind: input, shape index: {}]
  %s2 = inlined_call_operand.vmem [shape: f32[2,8,32], index: 2, kind: input, shape index: {}]
  %s3 = inlined_call_operand.hbm [shape: f32[2,4,32,32], index: 3, kind: input, shape index: {}]
  %s4 = inlined_call_operand.hbm [shape: f32[2,4,32,32], index: 4, kind: input, shape index: {}]
  %s5 = inlined_call_operand.vmem [shape: f32[2,4,1,32], index: 5, kind: input, shape index: {}]
  %s6 = inlined_call_operand.vmem [shape: f32[32,16], index: 6, kind: input, shape index: {}]
  %s7 = inlined_call_operand.vmem [shape: f32[1,16], index: 7, kind: input, shape index: {}]
  %s8 = inlined_call_operand.hbm [shape: f32[8,16], index: 8, kind: output, shape index: {0}]
  %s9 = inlined_call_operand.hbm [shape: f32[2,8,32], index: 9, kind: output, shape index: {1}]
  %s10 = inlined_call_operand.hbm [shape: f32[2,8,32], index: 10, kind: output, shape index: {2}]
  %11 = xla_tuple %s8, %s9, %s10
  %s12 = sld [smem:[#allocation0]]
  $region66: #{conductor_forward.1} parent=0
    _
  %s14 = ssub.s32 1, %s12
  %s15 = scalar_select 0, %s14, %s12
  $region1: #{conductor_forward.1} parent=0
    #allocation2 [shape = 'u8[131072]{0}', space=vmem, size = 0x20000, scoped, tag = 'input window, operand 3, single buffered']
    #allocation3 [shape = 's32[1]{0}', space=sflag, size = 0x4, scoped, tag = 'scoped memory for conductor_forward.1']
    #allocation4 [shape = 's32[1]{0}', space=sflag, size = 0x4, scoped, tag = 'scoped memory for conductor_forward.1']
    #allocation5 [shape = 'u8[131072]{0}', space=vmem, size = 0x20000, scoped, tag = 'input window, operand 4, single buffered']
    #allocation6 [shape = 's32[1]{0}', space=sflag, size = 0x4, scoped, tag = 'scoped memory for conductor_forward.1']
    #allocation7 [shape = 'u8[4096]{0}', space=vmem, size = 0x1000, scoped, tag = 'output window, operand 0, single buffered']
    #allocation8 [shape = 'u8[8192]{0}', space=vmem, size = 0x2000, scoped, tag = 'output window, operand 1, single buffered']
    #allocation9 [shape = 's32[1]{0}', space=sflag, size = 0x4, scoped, tag = 'scoped memory for conductor_forward.1']
    #allocation10 [shape = 'u8[8192]{0}', space=vmem, size = 0x2000, scoped, tag = 'output window, operand 2, single buffered']
    %16 = vsyncpa [#allocation3], 0
    %17 = vsyncpa [#allocation6], 0
    %18 = vsyncpa [#allocation4], 0
    %19 = vsyncpa [#allocation9], 0
    // Predicated region
    $region2: #{conductor_forward.1} parent=1 // pred_check
      _
    $region3: #{conductor_forward.1} parent=1 // pred_check_branch
      %21 = sbr.rel (0) target = $region5
    $region4: #{conductor_forward.1} parent=1 // pred_region
      _
    $region5: #{conductor_forward.1} parent=1 // pred_fallthru
      _
    // Predicated region
    $region6: #{conductor_forward.1} parent=1 // pred_check
      _
    $region7: #{conductor_forward.1} parent=1 // pred_check_branch
      %23 = sbr.rel (0) target = $region9
    $region8: #{conductor_forward.1} parent=1 // pred_region
      _
    $region9: #{conductor_forward.1} parent=1 // pred_fallthru
      _
    // Predicated region
    $region10: #{conductor_forward.1} parent=1 // pred_check
      _
    $region11: #{conductor_forward.1} parent=1 // pred_check_branch
      %25 = sbr.rel (0) target = $region13
    $region12: #{conductor_forward.1} parent=1 // pred_region
      _
    $region13: #{conductor_forward.1} parent=1 // pred_fallthru
      _
    // Predicated region
    $region14: #{conductor_forward.1} parent=1 // pred_check
      _
    $region15: #{conductor_forward.1} parent=1 // pred_check_branch
      %27 = sbr.rel (0) target = $region17
    $region16: #{conductor_forward.1} parent=1 // pred_region
      %29 = vsyncadd [#allocation3], 0
      %s30 = sshll.u32 %s3, 4
      %s31 = int_to_ptr.hbm [resolvable:$true] %s30
      %s32 = sshll.u32 [#allocation2], 4
      %s33 = int_to_ptr.vmem [resolvable:$true] %s32
      %38 = dma.hbm_to_vmem [thread:$0]  %s31, 4096, %s33, [#allocation3], 128, 128, 8
    $region17: #{conductor_forward.1} parent=1 // pred_fallthru
      _
    // Predicated region
    $region18: #{conductor_forward.1} parent=1 // pred_check
      _
    $region19: #{conductor_forward.1} parent=1 // pred_check_branch
      %40 = sbr.rel (0) target = $region21
    $region20: #{conductor_forward.1} parent=1 // pred_region
      %42 = vsyncadd [#allocation6], 0
      %s43 = sshll.u32 %s4, 4
      %s44 = int_to_ptr.hbm [resolvable:$true] %s43
      %s45 = sshll.u32 [#allocation5], 4
      %s46 = int_to_ptr.vmem [resolvable:$true] %s45
      %51 = dma.hbm_to_vmem [thread:$0]  %s44, 4096, %s46, [#allocation6], 128, 128, 8
    $region21: #{conductor_forward.1} parent=1 // pred_fallthru
      _
    // Predicated region
    $region22: #{conductor_forward.1} parent=1 // pred_check
      _
    $region23: #{conductor_forward.1} parent=1 // pred_check_branch
      %53 = sbr.rel (0) target = $region25
    $region24: #{conductor_forward.1} parent=1 // pred_region
      _
    $region25: #{conductor_forward.1} parent=1 // pred_fallthru
      _
    // Predicated region
    $region26: #{conductor_forward.1} parent=1 // pred_check
      _
    $region27: #{conductor_forward.1} parent=1 // pred_check_branch
      %55 = sbr.rel (0) target = $region29
    $region28: #{conductor_forward.1} parent=1 // pred_region
      _
    $region29: #{conductor_forward.1} parent=1 // pred_fallthru
      _
    // Predicated region
    $region30: #{conductor_forward.1} parent=1 // pred_check
      _
    $region31: #{conductor_forward.1} parent=1 // pred_check_branch
      %57 = sbr.rel (0) target = $region33
    $region32: #{conductor_forward.1} parent=1 // pred_region
      _
    $region33: #{conductor_forward.1} parent=1 // pred_fallthru
      _
    // Predicated region
    $region34: #{conductor_forward.1} parent=1 // pred_check
      _
    $region35: #{conductor_forward.1} parent=1 // pred_check_branch
      %59 = sbr.rel (0) target = $region37
    $region36: #{conductor_forward.1} parent=1 // pred_region
      %61 = dma.done [#allocation3], 4096
    $region37: #{conductor_forward.1} parent=1 // pred_fallthru
      _
    // Predicated region
    $region38: #{conductor_forward.1} parent=1 // pred_check
      _
    $region39: #{conductor_forward.1} parent=1 // pred_check_branch
      %63 = sbr.rel (0) target = $region41
    $region40: #{conductor_forward.1} parent=1 // pred_region
      %65 = dma.done [#allocation6], 4096
    $region41: #{conductor_forward.1} parent=1 // pred_fallthru
      _
    %v66 = vld [vmem:[%s0] sm:$0xff]
    %v67 = vld [vmem:[%s1] sm:$0xff]
    %v68 = vld [vmem:[%s2] sm:$0xff]
    %v69 = vld [vmem:[#allocation2] sm:$0xff]
    %v70 = vld [vmem:[#allocation2 + $0x8] sm:$0xff]
    %v71 = vld [vmem:[#allocation2 + $0x10] sm:$0xff]
    %v72 = vld [vmem:[#allocation2 + $0x18] sm:$0xff]
    %v73 = vld [vmem:[#allocation5] sm:$0xff]
    %v74 = vld [vmem:[#allocation5 + $0x8] sm:$0xff]
    %v75 = vld [vmem:[#allocation5 + $0x10] sm:$0xff]
    %v76 = vld [vmem:[#allocation5 + $0x18] sm:$0xff]
    %vm77 = vcmask 261120
    %v79 = vsel %vm77, %v67, 0
    %81 = vmatpush.msra.mxu0 0.0
    %82 = vmatpush.msra.mxu0 0.0
    %83 = vmatpush.msra.mxu0 0.0
    %84 = vmatpush.msra.mxu0 0.0
    %85 = vmatpush.msra.mxu0 0.0
    %86 = vmatpush.msra.mxu0 0.0
    %87 = vmatpush.msra.mxu0 0.0
    %88 = vmatpush.msra.mxu0 0.0
    %89 = vmatpush.msra.mxu0 0.0
    %90 = vmatpush.msra.mxu0 0.0
    %91 = vmatpush.msra.mxu0 0.0
    %92 = vmatpush.msra.mxu0 0.0
    %93 = vmatpush.msra.mxu0 %v76
    %94 = vmatpush.msra.mxu0 %v75
    %95 = vmatpush.msra.mxu0 %v74
    %96 = vmatpush.msra.mxu0 %v73
    %97 = vmatmul.f32.gmra.mxu0 %v79
    %v98 = vpop.f32.mrf.mxu0
    %v99 = vadd.f32 0.0, %v98
    %100 = vdwg.mxu0
    %v102 = vsel %vm77, %v66, 0
    %104 = vmatpush.msra.mxu0 0.0
    %105 = vmatpush.msra.mxu0 0.0
    %106 = vmatpush.msra.mxu0 0.0
    %107 = vmatpush.msra.mxu0 0.0
    %108 = vmatpush.msra.mxu0 0.0
    %109 = vmatpush.msra.mxu0 0.0
    %110 = vmatpush.msra.mxu0 0.0
    %111 = vmatpush.msra.mxu0 0.0
    %112 = vmatpush.msra.mxu0 0.0
    %113 = vmatpush.msra.mxu0 0.0
    %114 = vmatpush.msra.mxu0 0.0
    %115 = vmatpush.msra.mxu0 0.0
    %116 = vmatpush.msra.mxu0 %v72
    %117 = vmatpush.msra.mxu0 %v71
    %118 = vmatpush.msra.mxu0 %v70
    %119 = vmatpush.msra.mxu0 %v69
    %120 = vmatmul.f32.gmra.mxu0 %v102
    %v121 = vpop.f32.mrf.mxu0
    %v122 = vadd.f32 %v99, %v121
    %123 = vdwg.mxu0
    %v124 = vld [vmem:[%s5] sm:$0x1]
    %v126 = vperm.slane %v124, 0
    %v128 = vadd.f32 %v122, %v126
    %v129 = vxor.u32 %v128, 2147483648
    %v130 = vmul.f32 %v129, 1.442695
    %v131 = vpow.pop %v130
    %v132 = vadd.f32 %v131, 1.0
    %v133 = vrcp.pop %v132
    %v134 = vmul.f32 %v132, %v133
    %v135 = vsub.f32 1.0, %v134
    %v136 = vmul.f32 %v133, %v135
    %v137 = vadd.f32 %v133, %v136
    %vm138 = vweird.f32 %v132
    %vm139 = vweird.f32 %v133
    %vm140 = vmor %vm138, %vm139
    %v141 = vsel %vm140, %v133, %v137
    %v142 = vand.u32 2147483647, %v132
    %vm143 = vcmp.eq.f32.partialorder %v142, 8.507059e+37
    %v144 = vand.u32 %v132, 2147483648
    %v145 = vor.u32 1.1754944e-38, %v144
    %v146 = vsel %vm143, %v145, %v141
    %v147 = vmul.f32 1.0, %v146
    %s148 = scalar_lea.vmem [#allocation2], 32
    %v149 = vld [vmem:[%s148] sm:$0xff]
    %v150 = vld [vmem:[%s148 + $0x8] sm:$0xff]
    %v151 = vld [vmem:[%s148 + $0x10] sm:$0xff]
    %v152 = vld [vmem:[%s148 + $0x18] sm:$0xff]
    %s153 = scalar_lea.vmem [#allocation5], 32
    %v154 = vld [vmem:[%s153] sm:$0xff]
    %v155 = vld [vmem:[%s153 + $0x8] sm:$0xff]
    %v156 = vld [vmem:[%s153 + $0x10] sm:$0xff]
    %v157 = vld [vmem:[%s153 + $0x18] sm:$0xff]
    %158 = vmatpush.msra.mxu0 0.0
    %159 = vmatpush.msra.mxu0 0.0
    %160 = vmatpush.msra.mxu0 0.0
    %161 = vmatpush.msra.mxu0 0.0
    %162 = vmatpush.msra.mxu0 0.0
    %163 = vmatpush.msra.mxu0 0.0
    %164 = vmatpush.msra.mxu0 0.0
    %165 = vmatpush.msra.mxu0 0.0
    %166 = vmatpush.msra.mxu0 0.0
    %167 = vmatpush.msra.mxu0 0.0
    %168 = vmatpush.msra.mxu0 0.0
    %169 = vmatpush.msra.mxu0 0.0
    %170 = vmatpush.msra.mxu0 %v157
    %171 = vmatpush.msra.mxu0 %v156
    %172 = vmatpush.msra.mxu0 %v155
    %173 = vmatpush.msra.mxu0 %v154
    %174 = vmatmul.f32.gmra.mxu0 %v79
    %v175 = vpop.f32.mrf.mxu0
    %v176 = vadd.f32 0.0, %v175
    %177 = vdwg.mxu0
    %178 = vmatpush.msra.mxu0 0.0
    %179 = vmatpush.msra.mxu0 0.0
    %180 = vmatpush.msra.mxu0 0.0
    %181 = vmatpush.msra.mxu0 0.0
    %182 = vmatpush.msra.mxu0 0.0
    %183 = vmatpush.msra.mxu0 0.0
    %184 = vmatpush.msra.mxu0 0.0
    %185 = vmatpush.msra.mxu0 0.0
    %186 = vmatpush.msra.mxu0 0.0
    %187 = vmatpush.msra.mxu0 0.0
    %188 = vmatpush.msra.mxu0 0.0
    %189 = vmatpush.msra.mxu0 0.0
    %190 = vmatpush.msra.mxu0 %v152
    %191 = vmatpush.msra.mxu0 %v151
    %192 = vmatpush.msra.mxu0 %v150
    %193 = vmatpush.msra.mxu0 %v149
    %194 = vmatmul.f32.gmra.mxu0 %v102
    %v195 = vpop.f32.mrf.mxu0
    %v196 = vadd.f32 %v176, %v195
    %197 = vdwg.mxu0
    %s198 = scalar_lea.vmem %s5, 1
    %v199 = vld [vmem:[%s198] sm:$0x1]
    %v201 = vperm.slane %v199, 0
    %v203 = vadd.f32 %v196, %v201
    %v204 = vxor.u32 %v203, 2147483648
    %v205 = vmul.f32 %v204, 1.442695
    %v206 = vpow.pop %v205
    %v207 = vadd.f32 %v206, 1.0
    %v208 = vrcp.pop %v207
    %v209 = vmul.f32 %v207, %v208
    %v210 = vsub.f32 1.0, %v209
    %v211 = vmul.f32 %v208, %v210
    %v212 = vadd.f32 %v208, %v211
    %vm213 = vweird.f32 %v207
    %vm214 = vweird.f32 %v208
    %vm215 = vmor %vm213, %vm214
    %v216 = vsel %vm215, %v208, %v212
    %v217 = vand.u32 2147483647, %v207
    %vm218 = vcmp.eq.f32.partialorder %v217, 8.507059e+37
    %v219 = vand.u32 %v207, 2147483648
    %v220 = vor.u32 1.1754944e-38, %v219
    %v221 = vsel %vm218, %v220, %v216
    %v222 = vmul.f32 1.0, %v221
    %s223 = scalar_lea.vmem [#allocation2], 64
    %v224 = vld [vmem:[%s223] sm:$0xff]
    %v225 = vld [vmem:[%s223 + $0x8] sm:$0xff]
    %v226 = vld [vmem:[%s223 + $0x10] sm:$0xff]
    %v227 = vld [vmem:[%s223 + $0x18] sm:$0xff]
    %s228 = scalar_lea.vmem [#allocation5], 64
    %v229 = vld [vmem:[%s228] sm:$0xff]
    %v230 = vld [vmem:[%s228 + $0x8] sm:$0xff]
    %v231 = vld [vmem:[%s228 + $0x10] sm:$0xff]
    %v232 = vld [vmem:[%s228 + $0x18] sm:$0xff]
    %233 = vmatpush.msra.mxu0 0.0
    %234 = vmatpush.msra.mxu0 0.0
    %235 = vmatpush.msra.mxu0 0.0
    %236 = vmatpush.msra.mxu0 0.0
    %237 = vmatpush.msra.mxu0 0.0
    %238 = vmatpush.msra.mxu0 0.0
    %239 = vmatpush.msra.mxu0 0.0
    %240 = vmatpush.msra.mxu0 0.0
    %241 = vmatpush.msra.mxu0 0.0
    %242 = vmatpush.msra.mxu0 0.0
    %243 = vmatpush.msra.mxu0 0.0
    %244 = vmatpush.msra.mxu0 0.0
    %245 = vmatpush.msra.mxu0 %v232
    %246 = vmatpush.msra.mxu0 %v231
    %247 = vmatpush.msra.mxu0 %v230
    %248 = vmatpush.msra.mxu0 %v229
    %249 = vmatmul.f32.gmra.mxu0 %v79
    %v250 = vpop.f32.mrf.mxu0
    %v251 = vadd.f32 0.0, %v250
    %252 = vdwg.mxu0
    %253 = vmatpush.msra.mxu0 0.0
    %254 = vmatpush.msra.mxu0 0.0
    %255 = vmatpush.msra.mxu0 0.0
    %256 = vmatpush.msra.mxu0 0.0
    %257 = vmatpush.msra.mxu0 0.0
    %258 = vmatpush.msra.mxu0 0.0
    %259 = vmatpush.msra.mxu0 0.0
    %260 = vmatpush.msra.mxu0 0.0
    %261 = vmatpush.msra.mxu0 0.0
    %262 = vmatpush.msra.mxu0 0.0
    %263 = vmatpush.msra.mxu0 0.0
    %264 = vmatpush.msra.mxu0 0.0
    %265 = vmatpush.msra.mxu0 %v227
    %266 = vmatpush.msra.mxu0 %v226
    %267 = vmatpush.msra.mxu0 %v225
    %268 = vmatpush.msra.mxu0 %v224
    %269 = vmatmul.f32.gmra.mxu0 %v102
    %v270 = vpop.f32.mrf.mxu0
    %v271 = vadd.f32 %v251, %v270
    %272 = vdwg.mxu0
    %s273 = scalar_lea.vmem %s5, 2
    %v274 = vld [vmem:[%s273] sm:$0x1]
    %v276 = vperm.slane %v274, 0
    %v278 = vadd.f32 %v271, %v276
    %v279 = vtanh.pop %v278
    %s280 = scalar_lea.vmem [#allocation2], 96
    %v281 = vld [vmem:[%s280] sm:$0xff]
    %v282 = vld [vmem:[%s280 + $0x8] sm:$0xff]
    %v283 = vld [vmem:[%s280 + $0x10] sm:$0xff]
    %v284 = vld [vmem:[%s280 + $0x18] sm:$0xff]
    %s285 = scalar_lea.vmem [#allocation5], 96
    %v286 = vld [vmem:[%s285] sm:$0xff]
    %v287 = vld [vmem:[%s285 + $0x8] sm:$0xff]
    %v288 = vld [vmem:[%s285 + $0x10] sm:$0xff]
    %v289 = vld [vmem:[%s285 + $0x18] sm:$0xff]
    %290 = vmatpush.msra.mxu0 0.0
    %291 = vmatpush.msra.mxu0 0.0
    %292 = vmatpush.msra.mxu0 0.0
    %293 = vmatpush.msra.mxu0 0.0
    %294 = vmatpush.msra.mxu0 0.0
    %295 = vmatpush.msra.mxu0 0.0
    %296 = vmatpush.msra.mxu0 0.0
    %297 = vmatpush.msra.mxu0 0.0
    %298 = vmatpush.msra.mxu0 0.0
    %299 = vmatpush.msra.mxu0 0.0
    %300 = vmatpush.msra.mxu0 0.0
    %301 = vmatpush.msra.mxu0 0.0
    %302 = vmatpush.msra.mxu0 %v289
    %303 = vmatpush.msra.mxu0 %v288
    %304 = vmatpush.msra.mxu0 %v287
    %305 = vmatpush.msra.mxu0 %v286
    %306 = vmatmul.f32.gmra.mxu0 %v79
    %v307 = vpop.f32.mrf.mxu0
    %v308 = vadd.f32 0.0, %v307
    %309 = vdwg.mxu0
    %310 = vmatpush.msra.mxu0 0.0
    %311 = vmatpush.msra.mxu0 0.0
    %312 = vmatpush.msra.mxu0 0.0
    %313 = vmatpush.msra.mxu0 0.0
    %314 = vmatpush.msra.mxu0 0.0
    %315 = vmatpush.msra.mxu0 0.0
    %316 = vmatpush.msra.mxu0 0.0
    %317 = vmatpush.msra.mxu0 0.0
    %318 = vmatpush.msra.mxu0 0.0
    %319 = vmatpush.msra.mxu0 0.0
    %320 = vmatpush.msra.mxu0 0.0
    %321 = vmatpush.msra.mxu0 0.0
    %322 = vmatpush.msra.mxu0 %v284
    %323 = vmatpush.msra.mxu0 %v283
    %324 = vmatpush.msra.mxu0 %v282
    %325 = vmatpush.msra.mxu0 %v281
    %326 = vmatmul.f32.gmra.mxu0 %v102
    %v327 = vpop.f32.mrf.mxu0
    %v328 = vadd.f32 %v308, %v327
    %329 = vdwg.mxu0
    %s330 = scalar_lea.vmem %s5, 3
    %v331 = vld [vmem:[%s330] sm:$0x1]
    %v333 = vperm.slane %v331, 0
    %v335 = vadd.f32 %v328, %v333
    %v336 = vxor.u32 %v335, 2147483648
    %v337 = vmul.f32 %v336, 1.442695
    %v338 = vpow.pop %v337
    %v339 = vadd.f32 %v338, 1.0
    %v340 = vrcp.pop %v339
    %v341 = vmul.f32 %v339, %v340
    %v342 = vsub.f32 1.0, %v341
    %v343 = vmul.f32 %v340, %v342
    %v344 = vadd.f32 %v340, %v343
    %vm345 = vweird.f32 %v339
    %vm346 = vweird.f32 %v340
    %vm347 = vmor %vm345, %vm346
    %v348 = vsel %vm347, %v340, %v344
    %v349 = vand.u32 2147483647, %v339
    %vm350 = vcmp.eq.f32.partialorder %v349, 8.507059e+37
    %v351 = vand.u32 %v339, 2147483648
    %v352 = vor.u32 1.1754944e-38, %v351
    %v353 = vsel %vm350, %v352, %v348
    %v354 = vmul.f32 1.0, %v353
    %v355 = vmul.f32 %v222, %v68
    %v356 = vmul.f32 %v147, %v279
    %v357 = vadd.f32 %v355, %v356
    %v358 = vtanh.pop %v357
    %v359 = vmul.f32 %v354, %v358
    %360 = vst.msk [vmem:[#allocation8] sm:$0xff] %vm77, %v359
    %361 = vst.msk [vmem:[#allocation10] sm:$0xff] %vm77, %v357
    %s362 = scalar_lea.vmem %s1, 8
    %v363 = vld [vmem:[%s362] sm:$0xff]
    %s364 = scalar_lea.vmem %s2, 8
    %v365 = vld [vmem:[%s364] sm:$0xff]
    %s366 = scalar_lea.vmem [#allocation2], 128
    %v367 = vld [vmem:[%s366] sm:$0xff]
    %v368 = vld [vmem:[%s366 + $0x8] sm:$0xff]
    %v369 = vld [vmem:[%s366 + $0x10] sm:$0xff]
    %v370 = vld [vmem:[%s366 + $0x18] sm:$0xff]
    %s371 = scalar_lea.vmem [#allocation5], 128
    %v372 = vld [vmem:[%s371] sm:$0xff]
    %v373 = vld [vmem:[%s371 + $0x8] sm:$0xff]
    %v374 = vld [vmem:[%s371 + $0x10] sm:$0xff]
    %v375 = vld [vmem:[%s371 + $0x18] sm:$0xff]
    %v377 = vsel %vm77, %v363, 0
    %379 = vmatpush.msra.mxu0 0.0
    %380 = vmatpush.msra.mxu0 0.0
    %381 = vmatpush.msra.mxu0 0.0
    %382 = vmatpush.msra.mxu0 0.0
    %383 = vmatpush.msra.mxu0 0.0
    %384 = vmatpush.msra.mxu0 0.0
    %385 = vmatpush.msra.mxu0 0.0
    %386 = vmatpush.msra.mxu0 0.0
    %387 = vmatpush.msra.mxu0 0.0
    %388 = vmatpush.msra.mxu0 0.0
    %389 = vmatpush.msra.mxu0 0.0
    %390 = vmatpush.msra.mxu0 0.0
    %391 = vmatpush.msra.mxu0 %v375
    %392 = vmatpush.msra.mxu0 %v374
    %393 = vmatpush.msra.mxu0 %v373
    %394 = vmatpush.msra.mxu0 %v372
    %395 = vmatmul.f32.gmra.mxu0 %v377
    %v396 = vpop.f32.mrf.mxu0
    %v397 = vadd.f32 0.0, %v396
    %398 = vdwg.mxu0
    %v400 = vsel %vm77, %v359, 0
    %402 = vmatpush.msra.mxu0 0.0
    %403 = vmatpush.msra.mxu0 0.0
    %404 = vmatpush.msra.mxu0 0.0
    %405 = vmatpush.msra.mxu0 0.0
    %406 = vmatpush.msra.mxu0 0.0
    %407 = vmatpush.msra.mxu0 0.0
    %408 = vmatpush.msra.mxu0 0.0
    %409 = vmatpush.msra.mxu0 0.0
    %410 = vmatpush.msra.mxu0 0.0
    %411 = vmatpush.msra.mxu0 0.0
    %412 = vmatpush.msra.mxu0 0.0
    %413 = vmatpush.msra.mxu0 0.0
    %414 = vmatpush.msra.mxu0 %v370
    %415 = vmatpush.msra.mxu0 %v369
    %416 = vmatpush.msra.mxu0 %v368
    %417 = vmatpush.msra.mxu0 %v367
    %418 = vmatmul.f32.gmra.mxu0 %v400
    %v419 = vpop.f32.mrf.mxu0
    %v420 = vadd.f32 %v397, %v419
    %421 = vdwg.mxu0
    %s422 = scalar_lea.vmem %s5, 4
    %v423 = vld [vmem:[%s422] sm:$0x1]
    %v425 = vperm.slane %v423, 0
    %v427 = vadd.f32 %v420, %v425
    %v428 = vxor.u32 %v427, 2147483648
    %v429 = vmul.f32 %v428, 1.442695
    %v430 = vpow.pop %v429
    %v431 = vadd.f32 %v430, 1.0
    %v432 = vrcp.pop %v431
    %v433 = vmul.f32 %v431, %v432
    %v434 = vsub.f32 1.0, %v433
    %v435 = vmul.f32 %v432, %v434
    %v436 = vadd.f32 %v432, %v435
    %vm437 = vweird.f32 %v431
    %vm438 = vweird.f32 %v432
    %vm439 = vmor %vm437, %vm438
    %v440 = vsel %vm439, %v432, %v436
    %v441 = vand.u32 2147483647, %v431
    %vm442 = vcmp.eq.f32.partialorder %v441, 8.507059e+37
    %v443 = vand.u32 %v431, 2147483648
    %v444 = vor.u32 1.1754944e-38, %v443
    %v445 = vsel %vm442, %v444, %v440
    %v446 = vmul.f32 1.0, %v445
    %s447 = scalar_lea.vmem [#allocation2], 160
    %v448 = vld [vmem:[%s447] sm:$0xff]
    %v449 = vld [vmem:[%s447 + $0x8] sm:$0xff]
    %v450 = vld [vmem:[%s447 + $0x10] sm:$0xff]
    %v451 = vld [vmem:[%s447 + $0x18] sm:$0xff]
    %s452 = scalar_lea.vmem [#allocation5], 160
    %v453 = vld [vmem:[%s452] sm:$0xff]
    %v454 = vld [vmem:[%s452 + $0x8] sm:$0xff]
    %v455 = vld [vmem:[%s452 + $0x10] sm:$0xff]
    %v456 = vld [vmem:[%s452 + $0x18] sm:$0xff]
    %457 = vmatpush.msra.mxu0 0.0
    %458 = vmatpush.msra.mxu0 0.0
    %459 = vmatpush.msra.mxu0 0.0
    %460 = vmatpush.msra.mxu0 0.0
    %461 = vmatpush.msra.mxu0 0.0
    %462 = vmatpush.msra.mxu0 0.0
    %463 = vmatpush.msra.mxu0 0.0
    %464 = vmatpush.msra.mxu0 0.0
    %465 = vmatpush.msra.mxu0 0.0
    %466 = vmatpush.msra.mxu0 0.0
    %467 = vmatpush.msra.mxu0 0.0
    %468 = vmatpush.msra.mxu0 0.0
    %469 = vmatpush.msra.mxu0 %v456
    %470 = vmatpush.msra.mxu0 %v455
    %471 = vmatpush.msra.mxu0 %v454
    %472 = vmatpush.msra.mxu0 %v453
    %473 = vmatmul.f32.gmra.mxu0 %v377
    %v474 = vpop.f32.mrf.mxu0
    %v475 = vadd.f32 0.0, %v474
    %476 = vdwg.mxu0
    %477 = vmatpush.msra.mxu0 0.0
    %478 = vmatpush.msra.mxu0 0.0
    %479 = vmatpush.msra.mxu0 0.0
    %480 = vmatpush.msra.mxu0 0.0
    %481 = vmatpush.msra.mxu0 0.0
    %482 = vmatpush.msra.mxu0 0.0
    %483 = vmatpush.msra.mxu0 0.0
    %484 = vmatpush.msra.mxu0 0.0
    %485 = vmatpush.msra.mxu0 0.0
    %486 = vmatpush.msra.mxu0 0.0
    %487 = vmatpush.msra.mxu0 0.0
    %488 = vmatpush.msra.mxu0 0.0
    %489 = vmatpush.msra.mxu0 %v451
    %490 = vmatpush.msra.mxu0 %v450
    %491 = vmatpush.msra.mxu0 %v449
    %492 = vmatpush.msra.mxu0 %v448
    %493 = vmatmul.f32.gmra.mxu0 %v400
    %v494 = vpop.f32.mrf.mxu0
    %v495 = vadd.f32 %v475, %v494
    %496 = vdwg.mxu0
    %s497 = scalar_lea.vmem %s5, 5
    %v498 = vld [vmem:[%s497] sm:$0x1]
    %v500 = vperm.slane %v498, 0
    %v502 = vadd.f32 %v495, %v500
    %v503 = vxor.u32 %v502, 2147483648
    %v504 = vmul.f32 %v503, 1.442695
    %v505 = vpow.pop %v504
    %v506 = vadd.f32 %v505, 1.0
    %v507 = vrcp.pop %v506
    %v508 = vmul.f32 %v506, %v507
    %v509 = vsub.f32 1.0, %v508
    %v510 = vmul.f32 %v507, %v509
    %v511 = vadd.f32 %v507, %v510
    %vm512 = vweird.f32 %v506
    %vm513 = vweird.f32 %v507
    %vm514 = vmor %vm512, %vm513
    %v515 = vsel %vm514, %v507, %v511
    %v516 = vand.u32 2147483647, %v506
    %vm517 = vcmp.eq.f32.partialorder %v516, 8.507059e+37
    %v518 = vand.u32 %v506, 2147483648
    %v519 = vor.u32 1.1754944e-38, %v518
    %v520 = vsel %vm517, %v519, %v515
    %v521 = vmul.f32 1.0, %v520
    %s522 = scalar_lea.vmem [#allocation2], 192
    %v523 = vld [vmem:[%s522] sm:$0xff]
    %v524 = vld [vmem:[%s522 + $0x8] sm:$0xff]
    %v525 = vld [vmem:[%s522 + $0x10] sm:$0xff]
    %v526 = vld [vmem:[%s522 + $0x18] sm:$0xff]
    %s527 = scalar_lea.vmem [#allocation5], 192
    %v528 = vld [vmem:[%s527] sm:$0xff]
    %v529 = vld [vmem:[%s527 + $0x8] sm:$0xff]
    %v530 = vld [vmem:[%s527 + $0x10] sm:$0xff]
    %v531 = vld [vmem:[%s527 + $0x18] sm:$0xff]
    %532 = vmatpush.msra.mxu0 0.0
    %533 = vmatpush.msra.mxu0 0.0
    %534 = vmatpush.msra.mxu0 0.0
    %535 = vmatpush.msra.mxu0 0.0
    %536 = vmatpush.msra.mxu0 0.0
    %537 = vmatpush.msra.mxu0 0.0
    %538 = vmatpush.msra.mxu0 0.0
    %539 = vmatpush.msra.mxu0 0.0
    %540 = vmatpush.msra.mxu0 0.0
    %541 = vmatpush.msra.mxu0 0.0
    %542 = vmatpush.msra.mxu0 0.0
    %543 = vmatpush.msra.mxu0 0.0
    %544 = vmatpush.msra.mxu0 %v531
    %545 = vmatpush.msra.mxu0 %v530
    %546 = vmatpush.msra.mxu0 %v529
    %547 = vmatpush.msra.mxu0 %v528
    %548 = vmatmul.f32.gmra.mxu0 %v377
    %v549 = vpop.f32.mrf.mxu0
    %v550 = vadd.f32 0.0, %v549
    %551 = vdwg.mxu0
    %552 = vmatpush.msra.mxu0 0.0
    %553 = vmatpush.msra.mxu0 0.0
    %554 = vmatpush.msra.mxu0 0.0
    %555 = vmatpush.msra.mxu0 0.0
    %556 = vmatpush.msra.mxu0 0.0
    %557 = vmatpush.msra.mxu0 0.0
    %558 = vmatpush.msra.mxu0 0.0
    %559 = vmatpush.msra.mxu0 0.0
    %560 = vmatpush.msra.mxu0 0.0
    %561 = vmatpush.msra.mxu0 0.0
    %562 = vmatpush.msra.mxu0 0.0
    %563 = vmatpush.msra.mxu0 0.0
    %564 = vmatpush.msra.mxu0 %v526
    %565 = vmatpush.msra.mxu0 %v525
    %566 = vmatpush.msra.mxu0 %v524
    %567 = vmatpush.msra.mxu0 %v523
    %568 = vmatmul.f32.gmra.mxu0 %v400
    %v569 = vpop.f32.mrf.mxu0
    %v570 = vadd.f32 %v550, %v569
    %571 = vdwg.mxu0
    %s572 = scalar_lea.vmem %s5, 6
    %v573 = vld [vmem:[%s572] sm:$0x1]
    %v575 = vperm.slane %v573, 0
    %v577 = vadd.f32 %v570, %v575
    %v578 = vtanh.pop %v577
    %s579 = scalar_lea.vmem [#allocation2], 224
    %v580 = vld [vmem:[%s579] sm:$0xff]
    %v581 = vld [vmem:[%s579 + $0x8] sm:$0xff]
    %v582 = vld [vmem:[%s579 + $0x10] sm:$0xff]
    %v583 = vld [vmem:[%s579 + $0x18] sm:$0xff]
    %s584 = scalar_lea.vmem [#allocation5], 224
    %v585 = vld [vmem:[%s584] sm:$0xff]
    %v586 = vld [vmem:[%s584 + $0x8] sm:$0xff]
    %v587 = vld [vmem:[%s584 + $0x10] sm:$0xff]
    %v588 = vld [vmem:[%s584 + $0x18] sm:$0xff]
    %589 = vmatpush.msra.mxu0 0.0
    %590 = vmatpush.msra.mxu0 0.0
    %591 = vmatpush.msra.mxu0 0.0
    %592 = vmatpush.msra.mxu0 0.0
    %593 = vmatpush.msra.mxu0 0.0
    %594 = vmatpush.msra.mxu0 0.0
    %595 = vmatpush.msra.mxu0 0.0
    %596 = vmatpush.msra.mxu0 0.0
    %597 = vmatpush.msra.mxu0 0.0
    %598 = vmatpush.msra.mxu0 0.0
    %599 = vmatpush.msra.mxu0 0.0
    %600 = vmatpush.msra.mxu0 0.0
    %601 = vmatpush.msra.mxu0 %v588
    %602 = vmatpush.msra.mxu0 %v587
    %603 = vmatpush.msra.mxu0 %v586
    %604 = vmatpush.msra.mxu0 %v585
    %605 = vmatmul.f32.gmra.mxu0 %v377
    %v606 = vpop.f32.mrf.mxu0
    %v607 = vadd.f32 0.0, %v606
    %608 = vdwg.mxu0
    %609 = vmatpush.msra.mxu0 0.0
    %610 = vmatpush.msra.mxu0 0.0
    %611 = vmatpush.msra.mxu0 0.0
    %612 = vmatpush.msra.mxu0 0.0
    %613 = vmatpush.msra.mxu0 0.0
    %614 = vmatpush.msra.mxu0 0.0
    %615 = vmatpush.msra.mxu0 0.0
    %616 = vmatpush.msra.mxu0 0.0
    %617 = vmatpush.msra.mxu0 0.0
    %618 = vmatpush.msra.mxu0 0.0
    %619 = vmatpush.msra.mxu0 0.0
    %620 = vmatpush.msra.mxu0 0.0
    %621 = vmatpush.msra.mxu0 %v583
    %622 = vmatpush.msra.mxu0 %v582
    %623 = vmatpush.msra.mxu0 %v581
    %624 = vmatpush.msra.mxu0 %v580
    %625 = vmatmul.f32.gmra.mxu0 %v400
    %v626 = vpop.f32.mrf.mxu0
    %v627 = vadd.f32 %v607, %v626
    %628 = vdwg.mxu0
    %s629 = scalar_lea.vmem %s5, 7
    %v630 = vld [vmem:[%s629] sm:$0x1]
    %v632 = vperm.slane %v630, 0
    %v634 = vadd.f32 %v627, %v632
    %v635 = vxor.u32 %v634, 2147483648
    %v636 = vmul.f32 %v635, 1.442695
    %v637 = vpow.pop %v636
    %v638 = vadd.f32 %v637, 1.0
    %v639 = vrcp.pop %v638
    %v640 = vmul.f32 %v638, %v639
    %v641 = vsub.f32 1.0, %v640
    %v642 = vmul.f32 %v639, %v641
    %v643 = vadd.f32 %v639, %v642
    %vm644 = vweird.f32 %v638
    %vm645 = vweird.f32 %v639
    %vm646 = vmor %vm644, %vm645
    %v647 = vsel %vm646, %v639, %v643
    %v648 = vand.u32 2147483647, %v638
    %vm649 = vcmp.eq.f32.partialorder %v648, 8.507059e+37
    %v650 = vand.u32 %v638, 2147483648
    %v651 = vor.u32 1.1754944e-38, %v650
    %v652 = vsel %vm649, %v651, %v647
    %v653 = vmul.f32 1.0, %v652
    %v654 = vmul.f32 %v521, %v365
    %v655 = vmul.f32 %v446, %v578
    %v656 = vadd.f32 %v654, %v655
    %v657 = vtanh.pop %v656
    %v658 = vmul.f32 %v653, %v657
    %s659 = scalar_lea.vmem [#allocation8], 8
    %660 = vst.msk [vmem:[%s659] sm:$0xff] %vm77, %v658
    %s661 = scalar_lea.vmem [#allocation10], 8
    %662 = vst.msk [vmem:[%s661] sm:$0xff] %vm77, %v656
    %v663 = vld [vmem:[%s6] sm:$0xff]
    %v664 = vld [vmem:[%s6 + $0x8] sm:$0xff]
    %v665 = vld [vmem:[%s6 + $0x10] sm:$0xff]
    %v666 = vld [vmem:[%s6 + $0x18] sm:$0xff]
    %v667 = vld [vmem:[%s7] sm:$0x1]
    %v669 = vperm.slane %v667, 0
    %v672 = vsel %vm77, %v658, 0
    %674 = vmatpush.msra.mxu0 0.0
    %675 = vmatpush.msra.mxu0 0.0
    %676 = vmatpush.msra.mxu0 0.0
    %677 = vmatpush.msra.mxu0 0.0
    %678 = vmatpush.msra.mxu0 0.0
    %679 = vmatpush.msra.mxu0 0.0
    %680 = vmatpush.msra.mxu0 0.0
    %681 = vmatpush.msra.mxu0 0.0
    %682 = vmatpush.msra.mxu0 0.0
    %683 = vmatpush.msra.mxu0 0.0
    %684 = vmatpush.msra.mxu0 0.0
    %685 = vmatpush.msra.mxu0 0.0
    %686 = vmatpush.msra.mxu0 %v666
    %687 = vmatpush.msra.mxu0 %v665
    %688 = vmatpush.msra.mxu0 %v664
    %689 = vmatpush.msra.mxu0 %v663
    %690 = vmatmul.f32.gmra.mxu0 %v672
    %v691 = vpop.f32.mrf.mxu0
    %v692 = vadd.f32 %v669, %v691
    %693 = vdwg.mxu0
    %vm694 = vcmask 130048
    %695 = vst.msk [vmem:[#allocation7] sm:$0xff] %vm694, %v692
    // Predicated region
    $region42: #{conductor_forward.1} parent=1 // pred_check
      _
    $region43: #{conductor_forward.1} parent=1 // pred_check_branch
      %697 = sbr.rel (0) target = $region45
    $region44: #{conductor_forward.1} parent=1 // pred_region
      %699 = vsyncadd [#allocation4], 0
      %s701 = sshll.u32 [#allocation7], 4
      %s702 = int_to_ptr.vmem [resolvable:$true] %s701
      %s703 = sshll.u32 %s8, 4
      %s704 = int_to_ptr.hbm [resolvable:$true] %s703
      %706 = dma.vmem_to_hbm [thread:$0]  %s702, 128, %s704, [#allocation4]
    $region45: #{conductor_forward.1} parent=1 // pred_fallthru
      _
    // Predicated region
    $region46: #{conductor_forward.1} parent=1 // pred_check
      _
    $region47: #{conductor_forward.1} parent=1 // pred_check_branch
      %708 = sbr.rel (0) target = $region49
    $region48: #{conductor_forward.1} parent=1 // pred_region
      %710 = vsyncadd [#allocation9], 0
      %s711 = sshll.u32 [#allocation8], 4
      %s712 = int_to_ptr.vmem [resolvable:$true] %s711
      %s713 = sshll.u32 %s9, 4
      %s714 = int_to_ptr.hbm [resolvable:$true] %s713
      %719 = dma.vmem_to_hbm [thread:$0]  %s712, 256, %s714, [#allocation9], 128, 128, 8
    $region49: #{conductor_forward.1} parent=1 // pred_fallthru
      _
    // Predicated region
    $region50: #{conductor_forward.1} parent=1 // pred_check
      _
    $region51: #{conductor_forward.1} parent=1 // pred_check_branch
      %721 = sbr.rel (0) target = $region53
    $region52: #{conductor_forward.1} parent=1 // pred_region
      %723 = vsyncadd [#allocation9], 0
      %s724 = sshll.u32 [#allocation10], 4
      %s725 = int_to_ptr.vmem [resolvable:$true] %s724
      %s726 = sshll.u32 %s10, 4
      %s727 = int_to_ptr.hbm [resolvable:$true] %s726
      %732 = dma.vmem_to_hbm [thread:$0]  %s725, 256, %s727, [#allocation9], 128, 128, 8
    $region53: #{conductor_forward.1} parent=1 // pred_fallthru
      _
    // Predicated region
    $region54: #{conductor_forward.1} parent=1 // pred_check
      _
    $region55: #{conductor_forward.1} parent=1 // pred_check_branch
      %734 = sbr.rel (0) target = $region57
    $region56: #{conductor_forward.1} parent=1 // pred_region
      %736 = dma.done [#allocation4], 128
    $region57: #{conductor_forward.1} parent=1 // pred_fallthru
      _
    // Predicated region
    $region58: #{conductor_forward.1} parent=1 // pred_check
      _
    $region59: #{conductor_forward.1} parent=1 // pred_check_branch
      %738 = sbr.rel (0) target = $region61
    $region60: #{conductor_forward.1} parent=1 // pred_region
      %740 = dma.done [#allocation9], 256
    $region61: #{conductor_forward.1} parent=1 // pred_fallthru
      _
    // Predicated region
    $region62: #{conductor_forward.1} parent=1 // pred_check
      _
    $region63: #{conductor_forward.1} parent=1 // pred_check_branch
      %742 = sbr.rel (0) target = $region65
    $region64: #{conductor_forward.1} parent=1 // pred_region
      %744 = dma.done [#allocation9], 256
    $region65: #{conductor_forward.1} parent=1 // pred_fallthru
      _
    %745 = vsyncpa [#allocation3], 1
    %746 = vsyncpa [#allocation6], 1
    %747 = vsyncpa [#allocation4], 1
    %748 = vsyncpa [#allocation9], 1

</llo_original>
